<compile_context>
chip_gen: v5e
topology: v5e:2x2
jax: 0.10.0
libtpu: 0.0.40
codegen_flags: <defaults>
</compile_context>

<pallas_src>
import functools
import math

import jax
import jax.numpy as jnp
from jax import lax
from jax.experimental import pallas as pl
from jax.experimental.pallas import tpu as pltpu

EPS = 1e-5  # PyTorch F.layer_norm default eps


# ----------------------------------------------------------------------------- helpers
def _round_up(a, m):
    return ((a + m - 1) // m) * m


def _round_down(a, m):
    return (a // m) * m


def _sublane(itemsize):
    # f32 -> 8, bf16 -> 16, int8/fp8 -> 32 sublanes per vreg.
    return max(8, 32 // max(int(itemsize), 1))


def _physical_vmem_bytes():
    """Physical VMEM capacity; conservative 64 MiB (v7x per-TC) if the query is unavailable."""
    try:
        return int(pltpu.get_tpu_info().vmem_capacity_bytes)
    except Exception:
        return 64 * 1024 * 1024


# ----------------------------------------------------------------------- LayerNorm kernel
def _layernorm_kernel(x_ref, g_ref, b_ref, o_ref, *, inv_dim):
    # x_ref: (block_rows, dim) — the block's last dim is the *full* feature dim, so no
    # lane masking is needed for an exact mean/var.
    x = x_ref[...].astype(jnp.float32)
    mean = jnp.sum(x, axis=-1, keepdims=True) * inv_dim
    xc = x - mean
    var = jnp.sum(xc * xc, axis=-1, keepdims=True) * inv_dim
    y = xc * lax.rsqrt(var + EPS)                      # EUP slot — free under the HBM stream
    y = y * g_ref[...].astype(jnp.float32) + b_ref[...].astype(jnp.float32)
    o_ref[...] = y.astype(o_ref.dtype)


def layer_norm(x, gamma, beta, *, block_rows=None, out_dtype=None):
    """LayerNorm over the last axis of x (== F.layer_norm(x, x.shape[-1:], gamma, beta))."""
    orig_shape = x.shape
    dim = orig_shape[-1]
    rows = math.prod(orig_shape[:-1]) if len(orig_shape) > 1 else 1
    out_dtype = out_dtype if out_dtype is not None else x.dtype

    x_it = jnp.dtype(x.dtype).itemsize
    o_it = jnp.dtype(out_dtype).itemsize
    sub = max(_sublane(x_it), _sublane(o_it))
    vmem = _physical_vmem_bytes()
    budget = vmem // 2

    # Per-row working set: double-buffered in + out blocks plus f32 in-kernel temporaries
    # (x upcast and the f32 y before the output cast).
    row_bytes = dim * (2 * x_it + 2 * o_it + 2 * 4)
    if block_rows is not None:
        br = int(block_rows)
    else:
        br = min(max(budget // row_bytes, 1), 1 << 16)
    if br >= rows:
        br = rows                                   # single block; full-extent block is legal
    else:
        br = max(_round_down(br, sub), sub)
    grid_m = pl.cdiv(rows, br)                       # ragged tail handled by Pallas write mask

    x2 = x.reshape(rows, dim)
    g2 = gamma.reshape(1, dim).astype(jnp.float32)
    b2 = beta.reshape(1, dim).astype(jnp.float32)

    needed = br * row_bytes + 4 * dim * 4 + (1 << 20)
    vmem_limit = int(min(max(needed, 32 * 1024 * 1024), vmem * 3 // 4))

    kernel = functools.partial(_layernorm_kernel, inv_dim=1.0 / dim)
    out = pl.pallas_call(
        kernel,
        out_shape=jax.ShapeDtypeStruct((rows, dim), out_dtype),
        grid_spec=pltpu.PrefetchScalarGridSpec(
            num_scalar_prefetch=0,
            grid=(grid_m,),
            in_specs=[
                pl.BlockSpec((br, dim), lambda i: (i, 0)),
                pl.BlockSpec((1, dim), lambda i: (0, 0)),
                pl.BlockSpec((1, dim), lambda i: (0, 0)),
            ],
            out_specs=pl.BlockSpec((br, dim), lambda i: (i, 0)),
        ),
        compiler_params=pltpu.CompilerParams(
            dimension_semantics=("parallel",),
            vmem_limit_bytes=vmem_limit,
        ),
    )(x2, g2, b2)
    return out.reshape(orig_shape[:-1] + (dim,))


# ------------------------------------------------------------- fused LayerNorm -> Linear
def _ln_matmul_kernel(x_ref, g_ref, b_ref, w_ref, bias_ref, o_ref, y_ref,
                      *, inv_dim, has_bias, activation):
    # x_ref: (tm, dim); w_ref: (dim, tn) bf16; o_ref: (tm, tn); y_ref: (tm, dim) bf16 scratch.
    # LN is computed once per row tile (j == 0) and re-used for every N tile.
    @pl.when(pl.program_id(1) == 0)
    def _():
        x = x_ref[...].astype(jnp.float32)
        mean = jnp.sum(x, axis=-1, keepdims=True) * inv_dim
        xc = x - mean
        var = jnp.sum(xc * xc, axis=-1, keepdims=True) * inv_dim
        y = xc * lax.rsqrt(var + EPS)
        y = y * g_ref[...].astype(jnp.float32) + b_ref[...].astype(jnp.float32)
        y_ref[...] = y.astype(y_ref.dtype)           # bf16 staging for the MXU

    acc = jnp.dot(y_ref[...], w_ref[...], preferred_element_type=jnp.float32)
    if has_bias:
        acc = acc + bias_ref[...].astype(jnp.float32)
    if activation == "relu":
        acc = jnp.maximum(acc, 0.0)
    o_ref[...] = acc.astype(o_ref.dtype)


def layer_norm_matmul(x, gamma, beta, w, *, bias=None, activation=None,
                      out_dtype=None, block_rows=None, block_cols=None):
    """Computes activation(layer_norm(x) @ w + bias) with LN fused into the matmul prologue.

    Call once per fused weight group (e.g. W = concat([Wk, Wv, Wq], axis=1)) so x is read
    from HBM once and the LN statistics are computed once.  Operands are staged as bf16 for
    the MXU (f32 accumulation) — results match an f32 reference at ~1e-2 level.
    """
    orig_shape = x.shape
    dim = orig_shape[-1]
    assert w.shape[0] == dim, "weight inner dim must match feature dim"
    n_out = int(w.shape[1])
    rows = math.prod(orig_shape[:-1]) if len(orig_shape) > 1 else 1
    out_dtype = out_dtype if out_dtype is not None else x.dtype

    w_bf = w.astype(jnp.bfloat16)                    # halves the W DMA stream, native MXU rate
    x_it = jnp.dtype(x.dtype).itemsize
    o_it = jnp.dtype(out_dtype).itemsize
    sub = max(_sublane(x_it), _sublane(o_it))
    vmem = _physical_vmem_bytes()
    budget = vmem // 2

    # ---- N tile: keep W resident when its double buffer fits comfortably in VMEM.
    w_bytes = dim * n_out * 2
    if block_cols is not None:
        tn = int(block_cols)
    elif n_out % 128 != 0 or 2 * w_bytes <= budget // 2:
        tn = n_out                                   # W loaded once, stays resident
    else:
        tn = 512 if n_out % 512 == 0 else (256 if n_out % 256 == 0 else 128)
    n_tiles = pl.cdiv(n_out, tn)

    # ---- M tile: largest row tile whose full working set fits (x/out double buffers,
    # W-tile double buffer, bf16 LN scratch, f32 in-kernel temporaries and accumulator).
    def working_set(tm):
        return (2 * tm * dim * x_it
                + 2 * dim * tn * 2
                + 2 * tm * tn * o_it
                + tm * dim * 2
                + 2 * tm * dim * 4
                + tm * tn * 4)

    if block_rows is not None:
        tm = int(block_rows)
    else:
        tm = min(4096, _round_up(rows, sub))
        while tm > sub and working_set(tm) > budget:
            tm //= 2
    if tm >= rows:
        tm = rows
    else:
        tm = max(_round_down(tm, sub), sub)
    m_tiles = pl.cdiv(rows, tm)

    x2 = x.reshape(rows, dim)
    g2 = gamma.reshape(1, dim).astype(jnp.float32)
    b2 = beta.reshape(1, dim).astype(jnp.float32)
    has_bias = bias is not None
    bias2 = (bias.reshape(1, n_out).astype(jnp.float32) if has_bias
             else jnp.zeros((1, n_out), jnp.float32))

    needed = working_set(tm) + 4 * dim * 4 + 4 * n_out * 4 + (1 << 20)
    vmem_limit = int(min(max(needed, 32 * 1024 * 1024), vmem * 3 // 4))

    kernel = functools.partial(_ln_matmul_kernel, inv_dim=1.0 / dim,
                               has_bias=has_bias, activation=activation)
    out = pl.pallas_call(
        kernel,
        out_shape=jax.ShapeDtypeStruct((rows, n_out), out_dtype),
        grid_spec=pltpu.PrefetchScalarGridSpec(
            num_scalar_prefetch=0,
            grid=(m_tiles, n_tiles),
            in_specs=[
                pl.BlockSpec((tm, dim), lambda i, j: (i, 0)),
                pl.BlockSpec((1, dim), lambda i, j: (0, 0)),
                pl.BlockSpec((1, dim), lambda i, j: (0, 0)),
                pl.BlockSpec((dim, tn), lambda i, j: (0, j)),
                pl.BlockSpec((1, tn), lambda i, j: (0, j)),
            ],
            out_specs=pl.BlockSpec((tm, tn), lambda i, j: (i, j)),
            scratch_shapes=[pltpu.VMEM((tm, dim), jnp.bfloat16)],
        ),
        compiler_params=pltpu.CompilerParams(
            # j carries the LN scratch across N tiles -> must stay sequential.
            dimension_semantics=("parallel", "arbitrary"),
            vmem_limit_bytes=vmem_limit,
        ),
    )(x2, g2, b2, w_bf, bias2)

    return out.reshape(orig_shape[:-1] + (n_out,))


# ----------------------------------------------------------------------------------- main
if __name__ == "__main__":
    key = jax.random.PRNGKey(0)
    k1, k2, k3, k4, k5, k6, k7 = jax.random.split(key, 7)

    # Shapes consistent with TransformerLayer(d_input=32, d_ff=128, head_num=4, head_dim=16,
    # block_size=8, ...); batch=2, seq=block_size=8.
    batch, seq, d_input = 2, 8, 32
    head_num, head_dim = 4, 16
    d_model = head_num * head_dim                  # 64
    d_ff = 128

    x = jax.random.normal(k1, (batch, seq, d_input), dtype=jnp.float32)
    gamma = jnp.ones((d_input,), dtype=jnp.float32)    # LayerNorm.gamma init (ones)
    beta = jnp.zeros((d_input,), dtype=jnp.float32)    # LayerNorm.beta buffer (zeros)

    def ln_ref(v, g, b):
        m = jnp.mean(v, axis=-1, keepdims=True)
        var = jnp.mean((v - m) ** 2, axis=-1, keepdims=True)
        return (v - m) / jnp.sqrt(var + EPS) * g + b

    # --- 1) standalone LayerNorm (self.norm) ---
    y = jax.block_until_ready(layer_norm(x, gamma, beta))
    assert jnp.allclose(y, ln_ref(x, gamma, beta), atol=1e-5, rtol=1e-5), "layer_norm mismatch"

    # ragged rows + forced small tile -> multi-step grid with a write-masked partial tail block
    x_r = jax.random.normal(k2, (3, 7, d_input), dtype=jnp.float32)
    y_r = jax.block_until_ready(layer_norm(x_r, gamma, beta, block_rows=8))
    assert jnp.allclose(y_r, ln_ref(x_r, gamma, beta), atol=1e-5, rtol=1e-5), \
        "ragged layer_norm mismatch"

    # --- 2) fused LN -> [K|V|Q] projection: ONE pallas_call on the concatenated weight ---
    def mk_w(kk, shape, fan_in):
        ww = jax.random.normal(kk, shape, dtype=jnp.float32) / math.sqrt(fan_in)
        return ww.astype(jnp.bfloat16).astype(jnp.float32)   # bf16-representable weights

    wk = mk_w(k3, (d_input, d_model), d_input)
    wv = mk_w(k4, (d_input, d_model), d_input)
    wq = mk_w(k5, (d_input, d_model), d_input)
    w_kvq = jnp.concatenate([wk, wv, wq], axis=1)             # (d_input, 3*d_model)

    kvq = jax.block_until_ready(layer_norm_matmul(x, gamma, beta, w_kvq))
    k_p, v_p, q_p = jnp.split(kvq, 3, axis=-1)
    x_ln = ln_ref(x, gamma, beta)
    ref_kvq = jnp.matmul(x_ln, w_kvq, precision=lax.Precision.HIGHEST)
    # bf16 MXU operand staging: compare to the f32 reference with a loose tolerance.
    assert jnp.allclose(kvq, ref_kvq, atol=5e-2, rtol=5e-2), "fused LN->KVQ mismatch"

    # --- 3) qnorm / knorm on the projected q / k ---
    g_h = jnp.ones((d_model,), dtype=jnp.float32)
    b_h = jnp.zeros((d_model,), dtype=jnp.float32)
    qn = jax.block_until_ready(layer_norm(q_p, g_h, b_h))
    kn = jax.block_until_ready(layer_norm(k_p, g_h, b_h))
    assert jnp.allclose(qn, ln_ref(q_p, g_h, b_h), atol=1e-5, rtol=1e-5), "qnorm mismatch"
    assert jnp.allclose(kn, ln_ref(k_p, g_h, b_h), atol=1e-5, rtol=1e-5), "knorm mismatch"

    # --- 4) FFN prologue: LayerNorm(d_model) -> fc1 (bias-free) -> ReLU fused in one kernel ---
    w_fc1 = mk_w(k6, (d_model, d_ff), d_model)
    ffn_in = q_p                                            # stands in for the attention output
    h = jax.block_until_ready(
        layer_norm_matmul(ffn_in, g_h, b_h, w_fc1, activation="relu"))
    ref_h = jnp.maximum(
        jnp.matmul(ln_ref(ffn_in, g_h, b_h), w_fc1, precision=lax.Precision.HIGHEST), 0.0)
    assert jnp.allclose(h, ref_h, atol=5e-2, rtol=5e-2), "fused LN->fc1->ReLU mismatch"

    # --- 5) bias epilogue path (as used by nn.Linear layers with bias) ---
    bias1 = (jax.random.normal(k7, (d_ff,), dtype=jnp.float32) * 0.1)
    hb = jax.block_until_ready(
        layer_norm_matmul(ffn_in, g_h, b_h, w_fc1, bias=bias1, activation="relu"))
    ref_hb = jnp.maximum(
        jnp.matmul(ln_ref(ffn_in, g_h, b_h), w_fc1, precision=lax.Precision.HIGHEST) + bias1,
        0.0)
    assert jnp.allclose(hb, ref_hb, atol=5e-2, rtol=5e-2), "fused LN->fc1+bias->ReLU mismatch"

    print("KERNEL_OK")
</pallas_src>

<mosaic_0001>
module attributes {stable_mosaic.version = 11 : i64} {
  func.func @_layernorm_kernel(%arg0: i32, %arg1: memref<16x32xf32, #tpu.memory_space<vmem>>, %arg2: memref<1x32xf32, #tpu.memory_space<vmem>>, %arg3: memref<1x32xf32, #tpu.memory_space<vmem>>, %arg4: memref<16x32xf32, #tpu.memory_space<vmem>>) attributes {dimension_semantics = [#tpu.dimension_semantics<parallel>], iteration_bounds = array<i64: 1>, scalar_prefetch = 0 : i64, scratch_operands = 0 : i64, tpu.core_type = #tpu.core_type<tc>, window_params = [{transform_indices = @transform_0, window_bounds = array<i64: 16, 32>}, {pipeline_mode = #tpu.pipeline_mode<synchronous>, transform_indices = @transform_1, window_bounds = array<i64: 1, 32>}, {pipeline_mode = #tpu.pipeline_mode<synchronous>, transform_indices = @transform_2, window_bounds = array<i64: 1, 32>}, {transform_indices = @transform_3, window_bounds = array<i64: 16, 32>}]} {
    %c0 = arith.constant 0 : index
    %c0_0 = arith.constant 0 : index
    %0 = vector.load %arg1[%c0, %c0_0] : memref<16x32xf32, #tpu.memory_space<vmem>>, vector<16x32xf32>
    %cst = arith.constant dense<0.000000e+00> : vector<16xf32>
    %1 = vector.multi_reduction <add>, %0, %cst [1] : vector<16x32xf32> to vector<16xf32>
    %2 = vector.shape_cast %1 : vector<16xf32> to vector<16x1xf32>
    %cst_1 = arith.constant 3.125000e-02 : f32
    %3 = vector.broadcast %cst_1 : f32 to vector<16x1xf32>
    %4 = arith.mulf %2, %3 : vector<16x1xf32>
    %5 = vector.broadcast %4 : vector<16x1xf32> to vector<16x32xf32>
    %6 = arith.subf %0, %5 : vector<16x32xf32>
    %7 = arith.mulf %6, %6 : vector<16x32xf32>
    %cst_2 = arith.constant dense<0.000000e+00> : vector<16xf32>
    %8 = vector.multi_reduction <add>, %7, %cst_2 [1] : vector<16x32xf32> to vector<16xf32>
    %9 = vector.shape_cast %8 : vector<16xf32> to vector<16x1xf32>
    %cst_3 = arith.constant 3.125000e-02 : f32
    %10 = vector.broadcast %cst_3 : f32 to vector<16x1xf32>
    %11 = arith.mulf %9, %10 : vector<16x1xf32>
    %cst_4 = arith.constant 9.99999974E-6 : f32
    %12 = vector.broadcast %cst_4 : f32 to vector<16x1xf32>
    %13 = arith.addf %11, %12 : vector<16x1xf32>
    %14 = math.rsqrt %13 : vector<16x1xf32>
    %15 = vector.broadcast %14 : vector<16x1xf32> to vector<16x32xf32>
    %16 = arith.mulf %6, %15 : vector<16x32xf32>
    %c0_5 = arith.constant 0 : index
    %c0_6 = arith.constant 0 : index
    %17 = vector.load %arg2[%c0_5, %c0_6] : memref<1x32xf32, #tpu.memory_space<vmem>>, vector<1x32xf32>
    %18 = vector.broadcast %17 : vector<1x32xf32> to vector<16x32xf32>
    %19 = arith.mulf %16, %18 : vector<16x32xf32>
    %c0_7 = arith.constant 0 : index
    %c0_8 = arith.constant 0 : index
    %20 = vector.load %arg3[%c0_7, %c0_8] : memref<1x32xf32, #tpu.memory_space<vmem>>, vector<1x32xf32>
    %21 = vector.broadcast %20 : vector<1x32xf32> to vector<16x32xf32>
    %22 = arith.addf %19, %21 : vector<16x32xf32>
    %c0_9 = arith.constant 0 : index
    %c0_10 = arith.constant 0 : index
    %23 = vector.load %arg4[%c0_9, %c0_10] : memref<16x32xf32, #tpu.memory_space<vmem>>, vector<16x32xf32>
    tpu.vector_store %arg4[%c0_9, %c0_10], %22 {strides = array<i32>} : memref<16x32xf32, #tpu.memory_space<vmem>>, vector<16x32xf32>,
    return
  }
  func.func @transform_0(%arg0: i32) -> (i32, i32) {
    %c0_i32 = arith.constant 0 : i32
    %c0_i32_0 = arith.constant 0 : i32
    return %arg0, %c0_i32 : i32, i32
  }
  func.func @transform_1(%arg0: i32) -> (i32, i32) {
    %c0_i32 = arith.constant 0 : i32
    %c0_i32_0 = arith.constant 0 : i32
    %c0_i32_1 = arith.constant 0 : i32
    return %c0_i32, %c0_i32_0 : i32, i32
  }
  func.func @transform_2(%arg0: i32) -> (i32, i32) {
    %c0_i32 = arith.constant 0 : i32
    %c0_i32_0 = arith.constant 0 : i32
    %c0_i32_1 = arith.constant 0 : i32
    return %c0_i32, %c0_i32_0 : i32, i32
  }
  func.func @transform_3(%arg0: i32) -> (i32, i32) {
    %c0_i32 = arith.constant 0 : i32
    %c0_i32_0 = arith.constant 0 : i32
    return %arg0, %c0_i32 : i32, i32
  }
}

</mosaic_0001>

<llo_original>
// kernel: tpu_custom_call.1
$region0: #{tpu_custom_call.1}
  #allocation0 [shape = 'u32[]', space=smem, size = 0x4, offset = 0x4, fixed_abs, tag = 'smem constant byte address 0x4 - core index']
  #allocation1 [shape = 'u32[72,128]{1,0:T(1,128)}', space=vmem, size = 0x9000, scoped, tag = 'internal scratch']
  %s0 = inlined_call_operand.hbm [shape: f32[16,32], index: 0, kind: input, shape index: {}]
  %s1 = inlined_call_operand.hbm [shape: f32[1,32], index: 1, kind: input, shape index: {}]
  %s2 = inlined_call_operand.vmem [shape: f32[1,32], index: 2, kind: input, shape index: {}]
  %s3 = inlined_call_operand.hbm [shape: f32[16,32], index: 3, kind: output, shape index: {}]
  %s4 = sld [smem:[#allocation0]]
  $region30: #{tpu_custom_call.1} parent=0
    _
  %s6 = ssub.s32 1, %s4
  %s7 = scalar_select 0, %s6, %s4
  $region1: #{tpu_custom_call.1} parent=0
    #allocation2 [shape = 'u8[8192]{0}', space=vmem, size = 0x2000, scoped, tag = 'input window, operand 0, single buffered']
    #allocation3 [shape = 's32[1]{0}', space=sflag, size = 0x4, scoped, tag = 'scoped memory for tpu_custom_call.1']
    #allocation4 [shape = 's32[1]{0}', space=sflag, size = 0x4, scoped, tag = 'scoped memory for tpu_custom_call.1']
    #allocation5 [shape = 'u8[512]{0}', space=vmem, size = 0x400, scoped, tag = 'input window, operand 1, single buffered']
    #allocation6 [shape = 's32[1]{0}', space=sflag, size = 0x4, scoped, tag = 'scoped memory for tpu_custom_call.1']
    #allocation7 [shape = 'u8[8192]{0}', space=vmem, size = 0x2000, scoped, tag = 'output window, operand 0, single buffered']
    %8 = vsyncpa [#allocation3], 0
    %9 = vsyncpa [#allocation6], 0
    %10 = vsyncpa [#allocation4], 0
    // Predicated region
    $region2: #{tpu_custom_call.1} parent=1 // pred_check
      _
    $region3: #{tpu_custom_call.1} parent=1 // pred_check_branch
      %12 = sbr.rel (0) target = $region5
    $region4: #{tpu_custom_call.1} parent=1 // pred_region
      %14 = vsyncadd [#allocation3], 0
      %s15 = sshll.u32 %s0, 4
      %s16 = int_to_ptr.hbm [resolvable:$true] %s15
      %s17 = sshll.u32 [#allocation2], 4
      %s18 = int_to_ptr.vmem [resolvable:$true] %s17
      %23 = dma.hbm_to_vmem [thread:$0]  %s16, 256, %s18, [#allocation3], 128, 128, 8
    $region5: #{tpu_custom_call.1} parent=1 // pred_fallthru
      _
    // Predicated region
    $region6: #{tpu_custom_call.1} parent=1 // pred_check
      _
    $region7: #{tpu_custom_call.1} parent=1 // pred_check_branch
      %25 = sbr.rel (0) target = $region9
    $region8: #{tpu_custom_call.1} parent=1 // pred_region
      %27 = vsyncadd [#allocation6], 0
      %s29 = sshll.u32 %s1, 4
      %s30 = int_to_ptr.hbm [resolvable:$true] %s29
      %s31 = sshll.u32 [#allocation5], 4
      %s32 = int_to_ptr.vmem [resolvable:$true] %s31
      %34 = dma.hbm_to_vmem [thread:$0]  %s30, 16, %s32, [#allocation6]
    $region9: #{tpu_custom_call.1} parent=1 // pred_fallthru
      _
    // Predicated region
    $region10: #{tpu_custom_call.1} parent=1 // pred_check
      _
    $region11: #{tpu_custom_call.1} parent=1 // pred_check_branch
      %36 = sbr.rel (0) target = $region13
    $region12: #{tpu_custom_call.1} parent=1 // pred_region
      _
    $region13: #{tpu_custom_call.1} parent=1 // pred_fallthru
      _
    // Predicated region
    $region14: #{tpu_custom_call.1} parent=1 // pred_check
      _
    $region15: #{tpu_custom_call.1} parent=1 // pred_check_branch
      %38 = sbr.rel (0) target = $region17
    $region16: #{tpu_custom_call.1} parent=1 // pred_region
      %40 = dma.done [#allocation3], 256
    $region17: #{tpu_custom_call.1} parent=1 // pred_fallthru
      _
    // Predicated region
    $region18: #{tpu_custom_call.1} parent=1 // pred_check
      _
    $region19: #{tpu_custom_call.1} parent=1 // pred_check_branch
      %42 = sbr.rel (0) target = $region21
    $region20: #{tpu_custom_call.1} parent=1 // pred_region
      %44 = dma.done [#allocation6], 16
    $region21: #{tpu_custom_call.1} parent=1 // pred_fallthru
      _
    %v45 = vld [vmem:[#allocation2] sm:$0xff]
    %v46 = vld [vmem:[#allocation2 + $0x8] sm:$0xff]
    %vm47 = vcmask 261120
    %v48 = vsel %vm47, %v45, 0.0
    %49 = vadd.xlane.f32.xlu0 %v48
    %v50 = vpop.xlane.xlu0 %49
    %v51 = vsel %vm47, %v46, 0.0
    %52 = vadd.xlane.f32.xlu0 %v51
    %v53 = vpop.xlane.xlu0 %52
    %v54 = vmul.f32 %v50, 0.03125
    %v55 = vmul.f32 %v53, 0.03125
    %v56 = vsub.f32 %v45, %v54
    %v57 = vsub.f32 %v46, %v55
    %v58 = vmul.f32 %v56, %v56
    %v59 = vmul.f32 %v57, %v57
    %v60 = vsel %vm47, %v58, 0.0
    %61 = vadd.xlane.f32.xlu0 %v60
    %v62 = vpop.xlane.xlu0 %61
    %v63 = vsel %vm47, %v59, 0.0
    %64 = vadd.xlane.f32.xlu0 %v63
    %v65 = vpop.xlane.xlu0 %64
    %v66 = vmul.f32 %v62, 0.03125
    %v67 = vmul.f32 %v65, 0.03125
    %v68 = vadd.f32 %v66, 1e-05
    %v69 = vadd.f32 %v67, 1e-05
    %v70 = vrsqrt.pop %v68
    %v71 = vmul.f32 %v70, %v68
    %v72 = vmul.f32 %v71, %v70
    %v73 = vmul.f32 0.5, %v72
    %v74 = vsub.f32 1.5, %v73
    %v75 = vmul.f32 %v70, %v74
    %vm76 = vweird.f32 %v68
    %vm77 = vweird.f32 %v70
    %vm78 = vmor %vm76, %vm77
    %v79 = vsel %vm78, %v70, %v75
    %v80 = vrsqrt.pop %v69
    %v81 = vmul.f32 %v80, %v69
    %v82 = vmul.f32 %v81, %v80
    %v83 = vmul.f32 0.5, %v82
    %v84 = vsub.f32 1.5, %v83
    %v85 = vmul.f32 %v80, %v84
    %vm86 = vweird.f32 %v69
    %vm87 = vweird.f32 %v80
    %vm88 = vmor %vm86, %vm87
    %v89 = vsel %vm88, %v80, %v85
    %v90 = vmul.f32 %v56, %v79
    %v91 = vmul.f32 %v57, %v89
    %v92 = vld [vmem:[#allocation5] sm:$0x1]
    %v94 = vperm.slane %v92, 0
    %v96 = vmul.f32 %v90, %v94
    %v97 = vmul.f32 %v91, %v94
    %v98 = vld [vmem:[%s2] sm:$0x1]
    %v100 = vperm.slane %v98, 0
    %v102 = vadd.f32 %v96, %v100
    %v103 = vadd.f32 %v97, %v100
    %104 = vst.msk [vmem:[#allocation7] sm:$0xff] %vm47, %v102
    %105 = vst.msk [vmem:[#allocation7 + $0x8] sm:$0xff] %vm47, %v103
    // Predicated region
    $region22: #{tpu_custom_call.1} parent=1 // pred_check
      _
    $region23: #{tpu_custom_call.1} parent=1 // pred_check_branch
      %107 = sbr.rel (0) target = $region25
    $region24: #{tpu_custom_call.1} parent=1 // pred_region
      %109 = vsyncadd [#allocation4], 0
      %s110 = sshll.u32 [#allocation7], 4
      %s111 = int_to_ptr.vmem [resolvable:$true] %s110
      %s112 = sshll.u32 %s3, 4
      %s113 = int_to_ptr.hbm [resolvable:$true] %s112
      %118 = dma.vmem_to_hbm [thread:$0]  %s111, 256, %s113, [#allocation4], 128, 128, 8
    $region25: #{tpu_custom_call.1} parent=1 // pred_fallthru
      _
    // Predicated region
    $region26: #{tpu_custom_call.1} parent=1 // pred_check
      _
    $region27: #{tpu_custom_call.1} parent=1 // pred_check_branch
      %120 = sbr.rel (0) target = $region29
    $region28: #{tpu_custom_call.1} parent=1 // pred_region
      %122 = dma.done [#allocation4], 256
    $region29: #{tpu_custom_call.1} parent=1 // pred_fallthru
      _
    %123 = vsyncpa [#allocation3], 1
    %124 = vsyncpa [#allocation6], 1
    %125 = vsyncpa [#allocation4], 1

</llo_original>
